<compile_context>
chip_gen: v7x
topology: tpu7x:2x2x1
jax: 0.10.0
libtpu: 0.0.40
codegen_flags: <defaults>
</compile_context>

<pallas_src>
import functools

import jax
import jax.numpy as jnp
from jax.experimental import pallas as pl
from jax.experimental.pallas import tpu as pltpu


def _round_up(x, m):
    return ((x + m - 1) // m) * m


# ---------------------------------------------------------------------------
# Kernel 1: mix-hop propagation (hops 1..gdep).
# ---------------------------------------------------------------------------
def _mixhop_prop_kernel(a_ref, x_ref, h_ref, *, gdep, alpha, c_in):
    # a_ref: [Np, Np]   row-normalized adjacency, pre-scaled by (1 - alpha)
    # x_ref: [C, Np, TM]
    # h_ref: [gdep*C, Np, TM]  (row k*C + c  = hop k+1, channel c)
    a = a_ref[...]
    for c in range(c_in):
        xc = x_ref[c].astype(jnp.float32)          # [Np, TM]
        ax = alpha * xc                            # hoisted: reused every hop
        prev = xc
        for k in range(gdep):
            hn = jnp.dot(a, prev.astype(a.dtype),  # clean 2-D MXU matmul
                         preferred_element_type=jnp.float32)
            prev = ax + hn                         # f32 carry for accuracy
            h_ref[k * c_in + c] = prev.astype(h_ref.dtype)


# ---------------------------------------------------------------------------
# Kernel 2: fused 1x1 conv   out = W0 @ x + Wr @ hops + bias
# ---------------------------------------------------------------------------
def _conv1x1_kernel(w0_ref, wr_ref, b_ref, x_ref, h_ref, o_ref):
    acc = jnp.dot(w0_ref[...], x_ref[...], preferred_element_type=jnp.float32)
    acc = acc + jnp.dot(wr_ref[...], h_ref[...], preferred_element_type=jnp.float32)
    o_ref[...] = acc + b_ref[...]


def _conv1x1_kernel_x_only(w0_ref, b_ref, x_ref, o_ref):
    o_ref[...] = jnp.dot(w0_ref[...], x_ref[...],
                         preferred_element_type=jnp.float32) + b_ref[...]


def mixprop_pallas(x, adj, weight, bias, *, gdep, alpha,
                   tile_m=512, matmul_dtype=jnp.bfloat16):
    """x: [B, C_in, N, T], adj: [N, N], weight: [c_out, (gdep+1)*C_in], bias: [c_out]."""
    B, C, N, T = x.shape
    c_out = weight.shape[0]
    assert weight.shape[1] == (gdep + 1) * C
    M = B * T
    it = jnp.dtype(matmul_dtype).itemsize

    # ---- adjacency preprocessing hoisted out of the kernel, pre-scaled by (1-alpha)
    adj_f = adj.astype(jnp.float32) + jnp.eye(N, dtype=jnp.float32)
    a_norm = adj_f / jnp.sum(adj_f, axis=1, keepdims=True)
    a_scaled = (1.0 - float(alpha)) * a_norm

    # ---- padding: N to a sublane-friendly multiple, M to a lane-dense tile multiple
    Np = _round_up(N, 16)
    budget = 24 * 1024 * 1024   # conservative per-step VMEM budget (fits v7x 64 MiB/TC)

    def _est(tm):
        return (2 * C * Np * tm * it                      # x tile (double-buffered)
                + 2 * max(gdep, 1) * C * Np * tm * it     # hop output tile (double-buffered)
                + Np * Np * it                            # adjacency
                + 6 * Np * tm * 4)                        # f32 temporaries

    TM = min(_round_up(tile_m, 128), _round_up(M, 128))
    while TM > 128 and _est(TM) > budget:
        TM -= 128
    Mp = _round_up(M, TM)

    # x: [B, C, N, T] -> [C, N, B, T] -> [C, N, M] -> pad -> cast
    x_k = jnp.transpose(x, (1, 2, 0, 3)).reshape(C, N, M)
    x_k = jnp.pad(x_k, ((0, 0), (0, Np - N), (0, Mp - M))).astype(matmul_dtype)
    a_p = jnp.pad(a_scaled, ((0, Np - N), (0, Np - N))).astype(matmul_dtype)
    w0_p = weight[:, :C].astype(matmul_dtype)
    b_p = bias.reshape(c_out, 1).astype(jnp.float32)

    vlim1 = int(min(max(2 * _est(TM) + 4 * 1024 * 1024, 16 * 1024 * 1024),
                    48 * 1024 * 1024))

    # -------------------- kernel 1: propagation --------------------
    h_out = None
    if gdep > 0:
        flops1 = 2 * gdep * C * Np * Np * Mp
        bytes1 = x_k.size * it + gdep * C * Np * Mp * it + a_p.size * it
        h_out = pl.pallas_call(
            functools.partial(_mixhop_prop_kernel,
                              gdep=gdep, alpha=float(alpha), c_in=C),
            out_shape=jax.ShapeDtypeStruct((gdep * C, Np, Mp), matmul_dtype),
            grid_spec=pltpu.PrefetchScalarGridSpec(
                num_scalar_prefetch=0,
                grid=(Mp // TM,),
                in_specs=[
                    pl.BlockSpec((Np, Np), lambda i: (0, 0)),        # adjacency (invariant)
                    pl.BlockSpec((C, Np, TM), lambda i: (0, 0, i)),  # x tile
                ],
                out_specs=pl.BlockSpec((gdep * C, Np, TM), lambda i: (0, 0, i)),
            ),
            compiler_params=pltpu.CompilerParams(
                dimension_semantics=("parallel",), vmem_limit_bytes=vlim1),
            cost_estimate=pl.CostEstimate(flops=int(flops1), transcendentals=0,
                                          bytes_accessed=int(bytes1)),
        )(a_p, x_k)

    # -------------------- kernel 2: 1x1 conv --------------------
    cols = Np * Mp
    x2 = x_k.reshape(C, cols)          # free (contiguous) reshape in HBM
    TN = TM
    while TN * 2 <= min(cols, 4096) and cols % (TN * 2) == 0:
        TN *= 2
    grid2 = (cols // TN,)

    if gdep > 0:
        wr_p = weight[:, C:].astype(matmul_dtype)
        h2 = h_out.reshape(gdep * C, cols)   # free (contiguous) reshape in HBM
        flops2 = 2 * c_out * (gdep + 1) * C * cols
        bytes2 = (x2.size + h2.size + w0_p.size + wr_p.size) * it + c_out * cols * 4
        out2 = pl.pallas_call(
            _conv1x1_kernel,
            out_shape=jax.ShapeDtypeStruct((c_out, cols), jnp.float32),
            grid_spec=pltpu.PrefetchScalarGridSpec(
                num_scalar_prefetch=0,
                grid=grid2,
                in_specs=[
                    pl.BlockSpec((c_out, C), lambda i: (0, 0)),          # W0 (invariant)
                    pl.BlockSpec((c_out, gdep * C), lambda i: (0, 0)),   # Wr (invariant)
                    pl.BlockSpec((c_out, 1), lambda i: (0, 0)),          # bias (invariant)
                    pl.BlockSpec((C, TN), lambda i: (0, i)),             # x tile
                    pl.BlockSpec((gdep * C, TN), lambda i: (0, i)),      # hop tile
                ],
                out_specs=pl.BlockSpec((c_out, TN), lambda i: (0, i)),
            ),
            compiler_params=pltpu.CompilerParams(dimension_semantics=("parallel",)),
            cost_estimate=pl.CostEstimate(flops=int(flops2), transcendentals=0,
                                          bytes_accessed=int(bytes2)),
        )(w0_p, wr_p, b_p, x2, h2)
    else:
        out2 = pl.pallas_call(
            _conv1x1_kernel_x_only,
            out_shape=jax.ShapeDtypeStruct((c_out, cols), jnp.float32),
            grid_spec=pltpu.PrefetchScalarGridSpec(
                num_scalar_prefetch=0,
                grid=grid2,
                in_specs=[
                    pl.BlockSpec((c_out, C), lambda i: (0, 0)),
                    pl.BlockSpec((c_out, 1), lambda i: (0, 0)),
                    pl.BlockSpec((C, TN), lambda i: (0, i)),
                ],
                out_specs=pl.BlockSpec((c_out, TN), lambda i: (0, i)),
            ),
            compiler_params=pltpu.CompilerParams(dimension_semantics=("parallel",)),
        )(w0_p, b_p, x2)

    out = out2.reshape(c_out, Np, Mp)[:, :N, :M]            # strip padding
    # [c_out, N, M] -> [c_out, N, B, T] -> [B, c_out, N, T]
    return jnp.transpose(out.reshape(c_out, N, B, T), (2, 0, 1, 3))


def mixprop_reference(x, adj, weight, bias, *, gdep, alpha):
    """Pure-JAX reference mirroring the PyTorch module exactly."""
    N = adj.shape[0]
    adj = adj + jnp.eye(N, dtype=adj.dtype)
    d = adj.sum(axis=1)
    a = adj / d[:, None]
    h = x
    outs = [h]
    for _ in range(gdep):
        h = alpha * x + (1.0 - alpha) * jnp.einsum('bcwt,vw->bcvt', h, a)
        outs.append(h)
    ho = jnp.concatenate(outs, axis=1)
    # Conv2d 1x1: out[b,o,n,t] = sum_i W[o,i] * ho[b,i,n,t] + bias[o]
    return jnp.einsum('oi,bint->bont', weight, ho) + bias[None, :, None, None]


if __name__ == "__main__":
    B, C_in, N, T = 2, 4, 16, 8
    gdep, alpha = 2, 0.05
    c_out = 8

    key = jax.random.PRNGKey(0)
    kx, ka, kw, kb = jax.random.split(key, 4)

    x = jax.random.normal(kx, (B, C_in, N, T), dtype=jnp.float32)
    adj = jax.random.uniform(ka, (N, N), dtype=jnp.float32)            # non-negative adjacency
    # Conv2d(c_in*(gdep+1), c_out, kernel_size=(1,1)) parameters (deterministic init):
    weight = 0.1 * jax.random.normal(kw, (c_out, (gdep + 1) * C_in), dtype=jnp.float32)
    bias = 0.1 * jax.random.normal(kb, (c_out,), dtype=jnp.float32)
    # TODO(synk): mixprop stores `dropout` but never applies it in forward(); omitted.

    ref = mixprop_reference(x, adj, weight, bias, gdep=gdep, alpha=alpha)

    # Exactness check with f32 matmuls.
    out_f32 = mixprop_pallas(x, adj, weight, bias, gdep=gdep, alpha=alpha,
                             matmul_dtype=jnp.float32)
    out_f32 = jax.block_until_ready(out_f32)
    assert out_f32.shape == (B, c_out, N, T), out_f32.shape
    assert jnp.allclose(out_f32, ref, atol=5e-4, rtol=5e-4), \
        float(jnp.max(jnp.abs(out_f32 - ref)))

    # Optimized (default) bf16-MXU path: looser tolerance for bf16 rounding.
    out_bf16 = mixprop_pallas(x, adj, weight, bias, gdep=gdep, alpha=alpha)
    out_bf16 = jax.block_until_ready(out_bf16)
    assert out_bf16.shape == (B, c_out, N, T), out_bf16.shape
    assert jnp.allclose(out_bf16, ref, atol=1e-1, rtol=1e-1), \
        float(jnp.max(jnp.abs(out_bf16 - ref)))

    print("KERNEL_OK")
</pallas_src>

<mosaic_0001>
module attributes {stable_mosaic.version = 11 : i64} {
  func.func @_mixhop_prop_kernel(%arg0: i32, %arg1: memref<16x16xf32, #tpu.memory_space<vmem>>, %arg2: memref<4x16x128xf32, #tpu.memory_space<vmem>>, %arg3: memref<8x16x128xf32, #tpu.memory_space<vmem>>) attributes {dimension_semantics = [#tpu.dimension_semantics<parallel>], iteration_bounds = array<i64: 1>, scalar_prefetch = 0 : i64, scratch_operands = 0 : i64, tpu.core_type = #tpu.core_type<tc>, window_params = [{pipeline_mode = #tpu.pipeline_mode<synchronous>, transform_indices = @transform_0, window_bounds = array<i64: 16, 16>}, {transform_indices = @transform_1, window_bounds = array<i64: 4, 16, 128>}, {transform_indices = @transform_2, window_bounds = array<i64: 8, 16, 128>}]} {
    %c0 = arith.constant 0 : index
    %c0_0 = arith.constant 0 : index
    %0 = vector.load %arg1[%c0, %c0_0] : memref<16x16xf32, #tpu.memory_space<vmem>>, vector<16x16xf32>
    %c0_1 = arith.constant 0 : index
    %c0_2 = arith.constant 0 : index
    %c0_3 = arith.constant 0 : index
    %1 = vector.load %arg2[%c0_1, %c0_2, %c0_3] : memref<4x16x128xf32, #tpu.memory_space<vmem>>, vector<1x16x128xf32>
    %2 = vector.shape_cast %1 : vector<1x16x128xf32> to vector<16x128xf32>
    %cst = arith.constant 5.000000e-02 : f32
    %3 = vector.broadcast %cst : f32 to vector<16x128xf32>
    %4 = arith.mulf %3, %2 : vector<16x128xf32>
    %cst_4 = arith.constant dense<0.000000e+00> : vector<16x128xf32>
    %5 = tpu.matmul %0, %2, %cst_4 {dimension_numbers = #tpu.dot_dimension_numbers<[1], [0], [0], [1], [0, 0, 1, 1], [], []>} : vector<16x16xf32>, vector<16x128xf32>, vector<16x128xf32> -> vector<16x128xf32>
    %6 = arith.addf %4, %5 : vector<16x128xf32>
    %c0_5 = arith.constant 0 : index
    %c0_6 = arith.constant 0 : index
    %c0_7 = arith.constant 0 : index
    %7 = vector.load %arg3[%c0_5, %c0_6, %c0_7] : memref<8x16x128xf32, #tpu.memory_space<vmem>>, vector<1x16x128xf32>
    %8 = vector.shape_cast %7 : vector<1x16x128xf32> to vector<16x128xf32>
    %9 = vector.shape_cast %6 : vector<16x128xf32> to vector<1x16x128xf32>
    tpu.vector_store %arg3[%c0_5, %c0_6, %c0_7], %9 {strides = array<i32>} : memref<8x16x128xf32, #tpu.memory_space<vmem>>, vector<1x16x128xf32>,
    %cst_8 = arith.constant dense<0.000000e+00> : vector<16x128xf32>
    %10 = tpu.matmul %0, %6, %cst_8 {dimension_numbers = #tpu.dot_dimension_numbers<[1], [0], [0], [1], [0, 0, 1, 1], [], []>} : vector<16x16xf32>, vector<16x128xf32>, vector<16x128xf32> -> vector<16x128xf32>
    %11 = arith.addf %4, %10 : vector<16x128xf32>
    %c4 = arith.constant 4 : index
    %c0_9 = arith.constant 0 : index
    %c0_10 = arith.constant 0 : index
    %12 = vector.load %arg3[%c4, %c0_9, %c0_10] : memref<8x16x128xf32, #tpu.memory_space<vmem>>, vector<1x16x128xf32>
    %13 = vector.shape_cast %12 : vector<1x16x128xf32> to vector<16x128xf32>
    %14 = vector.shape_cast %11 : vector<16x128xf32> to vector<1x16x128xf32>
    tpu.vector_store %arg3[%c4, %c0_9, %c0_10], %14 {strides = array<i32>} : memref<8x16x128xf32, #tpu.memory_space<vmem>>, vector<1x16x128xf32>,
    %c1 = arith.constant 1 : index
    %c0_11 = arith.constant 0 : index
    %c0_12 = arith.constant 0 : index
    %15 = vector.load %arg2[%c1, %c0_11, %c0_12] : memref<4x16x128xf32, #tpu.memory_space<vmem>>, vector<1x16x128xf32>
    %16 = vector.shape_cast %15 : vector<1x16x128xf32> to vector<16x128xf32>
    %cst_13 = arith.constant 5.000000e-02 : f32
    %17 = vector.broadcast %cst_13 : f32 to vector<16x128xf32>
    %18 = arith.mulf %17, %16 : vector<16x128xf32>
    %cst_14 = arith.constant dense<0.000000e+00> : vector<16x128xf32>
    %19 = tpu.matmul %0, %16, %cst_14 {dimension_numbers = #tpu.dot_dimension_numbers<[1], [0], [0], [1], [0, 0, 1, 1], [], []>} : vector<16x16xf32>, vector<16x128xf32>, vector<16x128xf32> -> vector<16x128xf32>
    %20 = arith.addf %18, %19 : vector<16x128xf32>
    %c1_15 = arith.constant 1 : index
    %c0_16 = arith.constant 0 : index
    %c0_17 = arith.constant 0 : index
    %21 = vector.load %arg3[%c1_15, %c0_16, %c0_17] : memref<8x16x128xf32, #tpu.memory_space<vmem>>, vector<1x16x128xf32>
    %22 = vector.shape_cast %21 : vector<1x16x128xf32> to vector<16x128xf32>
    %23 = vector.shape_cast %20 : vector<16x128xf32> to vector<1x16x128xf32>
    tpu.vector_store %arg3[%c1_15, %c0_16, %c0_17], %23 {strides = array<i32>} : memref<8x16x128xf32, #tpu.memory_space<vmem>>, vector<1x16x128xf32>,
    %cst_18 = arith.constant dense<0.000000e+00> : vector<16x128xf32>
    %24 = tpu.matmul %0, %20, %cst_18 {dimension_numbers = #tpu.dot_dimension_numbers<[1], [0], [0], [1], [0, 0, 1, 1], [], []>} : vector<16x16xf32>, vector<16x128xf32>, vector<16x128xf32> -> vector<16x128xf32>
    %25 = arith.addf %18, %24 : vector<16x128xf32>
    %c5 = arith.constant 5 : index
    %c0_19 = arith.constant 0 : index
    %c0_20 = arith.constant 0 : index
    %26 = vector.load %arg3[%c5, %c0_19, %c0_20] : memref<8x16x128xf32, #tpu.memory_space<vmem>>, vector<1x16x128xf32>
    %27 = vector.shape_cast %26 : vector<1x16x128xf32> to vector<16x128xf32>
    %28 = vector.shape_cast %25 : vector<16x128xf32> to vector<1x16x128xf32>
    tpu.vector_store %arg3[%c5, %c0_19, %c0_20], %28 {strides = array<i32>} : memref<8x16x128xf32, #tpu.memory_space<vmem>>, vector<1x16x128xf32>,
    %c2 = arith.constant 2 : index
    %c0_21 = arith.constant 0 : index
    %c0_22 = arith.constant 0 : index
    %29 = vector.load %arg2[%c2, %c0_21, %c0_22] : memref<4x16x128xf32, #tpu.memory_space<vmem>>, vector<1x16x128xf32>
    %30 = vector.shape_cast %29 : vector<1x16x128xf32> to vector<16x128xf32>
    %cst_23 = arith.constant 5.000000e-02 : f32
    %31 = vector.broadcast %cst_23 : f32 to vector<16x128xf32>
    %32 = arith.mulf %31, %30 : vector<16x128xf32>
    %cst_24 = arith.constant dense<0.000000e+00> : vector<16x128xf32>
    %33 = tpu.matmul %0, %30, %cst_24 {dimension_numbers = #tpu.dot_dimension_numbers<[1], [0], [0], [1], [0, 0, 1, 1], [], []>} : vector<16x16xf32>, vector<16x128xf32>, vector<16x128xf32> -> vector<16x128xf32>
    %34 = arith.addf %32, %33 : vector<16x128xf32>
    %c2_25 = arith.constant 2 : index
    %c0_26 = arith.constant 0 : index
    %c0_27 = arith.constant 0 : index
    %35 = vector.load %arg3[%c2_25, %c0_26, %c0_27] : memref<8x16x128xf32, #tpu.memory_space<vmem>>, vector<1x16x128xf32>
    %36 = vector.shape_cast %35 : vector<1x16x128xf32> to vector<16x128xf32>
    %37 = vector.shape_cast %34 : vector<16x128xf32> to vector<1x16x128xf32>
    tpu.vector_store %arg3[%c2_25, %c0_26, %c0_27], %37 {strides = array<i32>} : memref<8x16x128xf32, #tpu.memory_space<vmem>>, vector<1x16x128xf32>,
    %cst_28 = arith.constant dense<0.000000e+00> : vector<16x128xf32>
    %38 = tpu.matmul %0, %34, %cst_28 {dimension_numbers = #tpu.dot_dimension_numbers<[1], [0], [0], [1], [0, 0, 1, 1], [], []>} : vector<16x16xf32>, vector<16x128xf32>, vector<16x128xf32> -> vector<16x128xf32>
    %39 = arith.addf %32, %38 : vector<16x128xf32>
    %c6 = arith.constant 6 : index
    %c0_29 = arith.constant 0 : index
    %c0_30 = arith.constant 0 : index
    %40 = vector.load %arg3[%c6, %c0_29, %c0_30] : memref<8x16x128xf32, #tpu.memory_space<vmem>>, vector<1x16x128xf32>
    %41 = vector.shape_cast %40 : vector<1x16x128xf32> to vector<16x128xf32>
    %42 = vector.shape_cast %39 : vector<16x128xf32> to vector<1x16x128xf32>
    tpu.vector_store %arg3[%c6, %c0_29, %c0_30], %42 {strides = array<i32>} : memref<8x16x128xf32, #tpu.memory_space<vmem>>, vector<1x16x128xf32>,
    %c3 = arith.constant 3 : index
    %c0_31 = arith.constant 0 : index
    %c0_32 = arith.constant 0 : index
    %43 = vector.load %arg2[%c3, %c0_31, %c0_32] : memref<4x16x128xf32, #tpu.memory_space<vmem>>, vector<1x16x128xf32>
    %44 = vector.shape_cast %43 : vector<1x16x128xf32> to vector<16x128xf32>
    %cst_33 = arith.constant 5.000000e-02 : f32
    %45 = vector.broadcast %cst_33 : f32 to vector<16x128xf32>
    %46 = arith.mulf %45, %44 : vector<16x128xf32>
    %cst_34 = arith.constant dense<0.000000e+00> : vector<16x128xf32>
    %47 = tpu.matmul %0, %44, %cst_34 {dimension_numbers = #tpu.dot_dimension_numbers<[1], [0], [0], [1], [0, 0, 1, 1], [], []>} : vector<16x16xf32>, vector<16x128xf32>, vector<16x128xf32> -> vector<16x128xf32>
    %48 = arith.addf %46, %47 : vector<16x128xf32>
    %c3_35 = arith.constant 3 : index
    %c0_36 = arith.constant 0 : index
    %c0_37 = arith.constant 0 : index
    %49 = vector.load %arg3[%c3_35, %c0_36, %c0_37] : memref<8x16x128xf32, #tpu.memory_space<vmem>>, vector<1x16x128xf32>
    %50 = vector.shape_cast %49 : vector<1x16x128xf32> to vector<16x128xf32>
    %51 = vector.shape_cast %48 : vector<16x128xf32> to vector<1x16x128xf32>
    tpu.vector_store %arg3[%c3_35, %c0_36, %c0_37], %51 {strides = array<i32>} : memref<8x16x128xf32, #tpu.memory_space<vmem>>, vector<1x16x128xf32>,
    %cst_38 = arith.constant dense<0.000000e+00> : vector<16x128xf32>
    %52 = tpu.matmul %0, %48, %cst_38 {dimension_numbers = #tpu.dot_dimension_numbers<[1], [0], [0], [1], [0, 0, 1, 1], [], []>} : vector<16x16xf32>, vector<16x128xf32>, vector<16x128xf32> -> vector<16x128xf32>
    %53 = arith.addf %46, %52 : vector<16x128xf32>
    %c7 = arith.constant 7 : index
    %c0_39 = arith.constant 0 : index
    %c0_40 = arith.constant 0 : index
    %54 = vector.load %arg3[%c7, %c0_39, %c0_40] : memref<8x16x128xf32, #tpu.memory_space<vmem>>, vector<1x16x128xf32>
    %55 = vector.shape_cast %54 : vector<1x16x128xf32> to vector<16x128xf32>
    %56 = vector.shape_cast %53 : vector<16x128xf32> to vector<1x16x128xf32>
    tpu.vector_store %arg3[%c7, %c0_39, %c0_40], %56 {strides = array<i32>} : memref<8x16x128xf32, #tpu.memory_space<vmem>>, vector<1x16x128xf32>,
    return
  }
  func.func @transform_0(%arg0: i32) -> (i32, i32) {
    %c0_i32 = arith.constant 0 : i32
    %c0_i32_0 = arith.constant 0 : i32
    %c0_i32_1 = arith.constant 0 : i32
    return %c0_i32, %c0_i32_0 : i32, i32
  }
  func.func @transform_1(%arg0: i32) -> (i32, i32, i32) {
    %c0_i32 = arith.constant 0 : i32
    %c0_i32_0 = arith.constant 0 : i32
    %c0_i32_1 = arith.constant 0 : i32
    return %c0_i32, %c0_i32_0, %arg0 : i32, i32, i32
  }
  func.func @transform_2(%arg0: i32) -> (i32, i32, i32) {
    %c0_i32 = arith.constant 0 : i32
    %c0_i32_0 = arith.constant 0 : i32
    %c0_i32_1 = arith.constant 0 : i32
    return %c0_i32, %c0_i32_0, %arg0 : i32, i32, i32
  }
}

</mosaic_0001>

<llo_original>
// kernel: tpu_custom_call.1
$region0: #{tpu_custom_call.1}
  #allocation0 [shape = 'u32[]', space=smem, size = 0x4, offset = 0x4, fixed_abs, tag = 'smem constant byte address 0x4 - core index']
  #allocation1 [shape = 'u32[144,128]{1,0:T(1,128)}', space=vmem, size = 0x12000, scoped, tag = 'internal scratch']
  %s0 = inlined_call_operand.hbm [shape: f32[16,16], index: 0, kind: input, shape index: {}]
  %s1 = inlined_call_operand.hbm [shape: f32[4,16,128], index: 1, kind: input, shape index: {}]
  %s2 = inlined_call_operand.hbm [shape: f32[8,16,128], index: 2, kind: output, shape index: {}]
  %s3 = sld [smem:[#allocation0]]
  $region26: #{tpu_custom_call.1} parent=0
    _
  %s5 = ssub.s32 1, %s3
  %s6 = scalar_select 0, %s5, %s3
  $region1: #{tpu_custom_call.1} parent=0
    #allocation2 [shape = 'u8[8192]{0}', space=vmem, size = 0x2000, scoped, tag = 'input window, operand 0, single buffered']
    #allocation3 [shape = 's32[1]{0}', space=sflag, size = 0x4, scoped, tag = 'scoped memory for tpu_custom_call.1']
    #allocation4 [shape = 's32[1]{0}', space=sflag, size = 0x4, scoped, tag = 'scoped memory for tpu_custom_call.1']
    #allocation5 [shape = 'u8[32768]{0}', space=vmem, size = 0x8000, scoped, tag = 'input window, operand 1, single buffered']
    #allocation6 [shape = 's32[1]{0}', space=sflag, size = 0x4, scoped, tag = 'scoped memory for tpu_custom_call.1']
    #allocation7 [shape = 'u8[65536]{0}', space=vmem, size = 0x10000, scoped, tag = 'output window, operand 0, single buffered']
    %7 = vsyncpa [#allocation3], 0
    %8 = vsyncpa [#allocation6], 0
    %9 = vsyncpa [#allocation4], 0
    // Predicated region
    $region2: #{tpu_custom_call.1} parent=1 // pred_check
      _
    $region3: #{tpu_custom_call.1} parent=1 // pred_check_branch
      %11 = sbr.rel (0) target = $region5
    $region4: #{tpu_custom_call.1} parent=1 // pred_region
      %s13 = ssub.s32 256, 256
      %14 = vsyncadd [#allocation3], %s13
      %s15 = sshll.u32 [#allocation2], 4
      %s16 = int_to_ptr.vmem [resolvable:$true] %s15
      %21 = dma.hbm_to_vmem [thread:$0]  %s0, 256, %s16, [#allocation3], 128, 128, 8
    $region5: #{tpu_custom_call.1} parent=1 // pred_fallthru
      _
    // Predicated region
    $region6: #{tpu_custom_call.1} parent=1 // pred_check
      _
    $region7: #{tpu_custom_call.1} parent=1 // pred_check_branch
      %23 = sbr.rel (0) target = $region9
    $region8: #{tpu_custom_call.1} parent=1 // pred_region
      %s25 = ssub.s32 1024, 1024
      %26 = vsyncadd [#allocation6], %s25
      %s27 = sshll.u32 [#allocation5], 4
      %s28 = int_to_ptr.vmem [resolvable:$true] %s27
      %33 = dma.hbm_to_vmem [thread:$0]  %s1, 1024, %s28, [#allocation6], 128, 128, 8
    $region9: #{tpu_custom_call.1} parent=1 // pred_fallthru
      _
    // Predicated region
    $region10: #{tpu_custom_call.1} parent=1 // pred_check
      _
    $region11: #{tpu_custom_call.1} parent=1 // pred_check_branch
      %35 = sbr.rel (0) target = $region13
    $region12: #{tpu_custom_call.1} parent=1 // pred_region
      %36 = dma.done [#allocation3], 256
    $region13: #{tpu_custom_call.1} parent=1 // pred_fallthru
      _
    // Predicated region
    $region14: #{tpu_custom_call.1} parent=1 // pred_check
      _
    $region15: #{tpu_custom_call.1} parent=1 // pred_check_branch
      %38 = sbr.rel (0) target = $region17
    $region16: #{tpu_custom_call.1} parent=1 // pred_region
      %39 = dma.done [#allocation6], 1024
    $region17: #{tpu_custom_call.1} parent=1 // pred_fallthru
      _
    %v40 = vld [vmem:[#allocation2] sm:$0xff]
    %v41 = vld [vmem:[#allocation2 + $0x8] sm:$0xff]
    %v42 = vld [vmem:[#allocation5] sm:$0xff]
    %v43 = vld [vmem:[#allocation5 + $0x8] sm:$0xff]
    %v44 = vmul.f32 %v42, 0.05
    %v45 = vmul.f32 %v43, 0.05
    %vm46 = vcmask 130048
    %v48 = vsel %vm46, %v40, 0
    %v51 = vsel %vm46, %v41, 0
    %53 = vmatprep.subr.mxu0 0.0
    %54 = vmatpush1.msra.mxu0 %v42
    %55 = vmatprep.subr.mxu0 0.0
    %56 = vmatpush1.msra.mxu0 %v43
    %57 = vmatprep.subr.mxu0 0.0
    %58 = vmatpush1.msra.mxu0 0.0
    %59 = vmatprep.subr.mxu0 0.0
    %60 = vmatpush1.msra.mxu0 0.0
    %61 = vmatprep.subr.mxu0 0.0
    %62 = vmatpush1.msra.mxu0 0.0
    %63 = vmatprep.subr.mxu0 0.0
    %64 = vmatpush1.msra.mxu0 0.0
    %65 = vmatprep.subr.mxu0 0.0
    %66 = vmatpush1.msra.mxu0 0.0
    %67 = vmatprep.subr.mxu0 0.0
    %68 = vmatpush1.msra.mxu0 0.0
    %69 = vmatprep.subr.mxu0 0.0
    %70 = vmatpush1.msra.mxu0 0.0
    %71 = vmatprep.subr.mxu0 0.0
    %72 = vmatpush1.msra.mxu0 0.0
    %73 = vmatprep.subr.mxu0 0.0
    %74 = vmatpush1.msra.mxu0 0.0
    %75 = vmatprep.subr.mxu0 0.0
    %76 = vmatpush1.msra.mxu0 0.0
    %77 = vmatprep.subr.mxu0 0.0
    %78 = vmatpush1.msra.mxu0 0.0
    %79 = vmatprep.subr.mxu0 0.0
    %80 = vmatpush1.msra.mxu0 0.0
    %81 = vmatprep.subr.mxu0 0.0
    %82 = vmatpush1.msra.mxu0 0.0
    %83 = vmatprep.subr.mxu0 0.0
    %84 = vmatpush1.msra.mxu0 0.0
    %85 = vmatprep.subr.mxu0 0.0
    %86 = vmatpush1.msra.mxu0 0.0
    %87 = vmatprep.subr.mxu0 0.0
    %88 = vmatpush1.msra.mxu0 0.0
    %89 = vmatprep.subr.mxu0 0.0
    %90 = vmatpush1.msra.mxu0 0.0
    %91 = vmatprep.subr.mxu0 0.0
    %92 = vmatpush1.msra.mxu0 0.0
    %93 = vmatprep.subr.mxu0 0.0
    %94 = vmatpush1.msra.mxu0 0.0
    %95 = vmatprep.subr.mxu0 0.0
    %96 = vmatpush1.msra.mxu0 0.0
    %97 = vmatprep.subr.mxu0 0.0
    %98 = vmatpush1.msra.mxu0 0.0
    %99 = vmatprep.subr.mxu0 0.0
    %100 = vmatpush1.msra.mxu0 0.0
    %101 = vmatprep.subr.mxu0 0.0
    %102 = vmatpush1.msra.mxu0 0.0
    %103 = vmatprep.subr.mxu0 0.0
    %104 = vmatpush1.msra.mxu0 0.0
    %105 = vmatprep.subr.mxu0 0.0
    %106 = vmatpush1.msra.mxu0 0.0
    %107 = vmatprep.subr.mxu0 0.0
    %108 = vmatpush1.msra.mxu0 0.0
    %109 = vmatprep.subr.mxu0 0.0
    %110 = vmatpush1.msra.mxu0 0.0
    %111 = vmatprep.subr.mxu0 0.0
    %112 = vmatpush1.msra.mxu0 0.0
    %113 = vmatprep.subr.mxu0 0.0
    %114 = vmatpush1.msra.mxu0 0.0
    %115 = vmatprep.subr.mxu0 0.0
    %116 = vmatpush1.msra.mxu0 0.0
    %117 = vmatprep.mubr.f32.mxu0 0.0
    %118 = vmatmul.mubr.f32.gmra.mrb[0].mxu0 %v48
    %v119 = vpop.f32.mrb[0].mxu0
    %v120 = vadd.f32 0.0, %v119
    %v121 = vpop.f32.mrb[0].mxu0
    %122 = vmatprep.mubr.f32.mxu0 0.0
    %123 = vmatmul.mubr.f32.gmra.mrb[0].mxu0 %v51
    %v124 = vpop.f32.mrb[0].mxu0
    %v125 = vadd.f32 0.0, %v124
    %v126 = vpop.f32.mrb[0].mxu0
    %127 = vdwg.mxu0
    %v128 = vadd.f32 %v44, %v120
    %v129 = vadd.f32 %v45, %v125
    %130 = vst [vmem:[#allocation7] sm:$0xff] %v128
    %131 = vst [vmem:[#allocation7 + $0x8] sm:$0xff] %v129
    %132 = vmatprep.subr.mxu0 0.0
    %133 = vmatpush1.msra.mxu0 %v128
    %134 = vmatprep.subr.mxu0 0.0
    %135 = vmatpush1.msra.mxu0 %v129
    %136 = vmatprep.subr.mxu0 0.0
    %137 = vmatpush1.msra.mxu0 0.0
    %138 = vmatprep.subr.mxu0 0.0
    %139 = vmatpush1.msra.mxu0 0.0
    %140 = vmatprep.subr.mxu0 0.0
    %141 = vmatpush1.msra.mxu0 0.0
    %142 = vmatprep.subr.mxu0 0.0
    %143 = vmatpush1.msra.mxu0 0.0
    %144 = vmatprep.subr.mxu0 0.0
    %145 = vmatpush1.msra.mxu0 0.0
    %146 = vmatprep.subr.mxu0 0.0
    %147 = vmatpush1.msra.mxu0 0.0
    %148 = vmatprep.subr.mxu0 0.0
    %149 = vmatpush1.msra.mxu0 0.0
    %150 = vmatprep.subr.mxu0 0.0
    %151 = vmatpush1.msra.mxu0 0.0
    %152 = vmatprep.subr.mxu0 0.0
    %153 = vmatpush1.msra.mxu0 0.0
    %154 = vmatprep.subr.mxu0 0.0
    %155 = vmatpush1.msra.mxu0 0.0
    %156 = vmatprep.subr.mxu0 0.0
    %157 = vmatpush1.msra.mxu0 0.0
    %158 = vmatprep.subr.mxu0 0.0
    %159 = vmatpush1.msra.mxu0 0.0
    %160 = vmatprep.subr.mxu0 0.0
    %161 = vmatpush1.msra.mxu0 0.0
    %162 = vmatprep.subr.mxu0 0.0
    %163 = vmatpush1.msra.mxu0 0.0
    %164 = vmatprep.subr.mxu0 0.0
    %165 = vmatpush1.msra.mxu0 0.0
    %166 = vmatprep.subr.mxu0 0.0
    %167 = vmatpush1.msra.mxu0 0.0
    %168 = vmatprep.subr.mxu0 0.0
    %169 = vmatpush1.msra.mxu0 0.0
    %170 = vmatprep.subr.mxu0 0.0
    %171 = vmatpush1.msra.mxu0 0.0
    %172 = vmatprep.subr.mxu0 0.0
    %173 = vmatpush1.msra.mxu0 0.0
    %174 = vmatprep.subr.mxu0 0.0
    %175 = vmatpush1.msra.mxu0 0.0
    %176 = vmatprep.subr.mxu0 0.0
    %177 = vmatpush1.msra.mxu0 0.0
    %178 = vmatprep.subr.mxu0 0.0
    %179 = vmatpush1.msra.mxu0 0.0
    %180 = vmatprep.subr.mxu0 0.0
    %181 = vmatpush1.msra.mxu0 0.0
    %182 = vmatprep.subr.mxu0 0.0
    %183 = vmatpush1.msra.mxu0 0.0
    %184 = vmatprep.subr.mxu0 0.0
    %185 = vmatpush1.msra.mxu0 0.0
    %186 = vmatprep.subr.mxu0 0.0
    %187 = vmatpush1.msra.mxu0 0.0
    %188 = vmatprep.subr.mxu0 0.0
    %189 = vmatpush1.msra.mxu0 0.0
    %190 = vmatprep.subr.mxu0 0.0
    %191 = vmatpush1.msra.mxu0 0.0
    %192 = vmatprep.subr.mxu0 0.0
    %193 = vmatpush1.msra.mxu0 0.0
    %194 = vmatprep.subr.mxu0 0.0
    %195 = vmatpush1.msra.mxu0 0.0
    %196 = vmatprep.mubr.f32.mxu0 0.0
    %197 = vmatmul.mubr.f32.gmra.mrb[0].mxu0 %v48
    %v198 = vpop.f32.mrb[0].mxu0
    %v199 = vadd.f32 0.0, %v198
    %v200 = vpop.f32.mrb[0].mxu0
    %201 = vmatprep.mubr.f32.mxu0 0.0
    %202 = vmatmul.mubr.f32.gmra.mrb[0].mxu0 %v51
    %v203 = vpop.f32.mrb[0].mxu0
    %v204 = vadd.f32 0.0, %v203
    %v205 = vpop.f32.mrb[0].mxu0
    %206 = vdwg.mxu0
    %v207 = vadd.f32 %v44, %v199
    %v208 = vadd.f32 %v45, %v204
    %s209 = scalar_lea.vmem [#allocation7], 64
    %210 = vst [vmem:[%s209] sm:$0xff] %v207
    %211 = vst [vmem:[%s209 + $0x8] sm:$0xff] %v208
    %s212 = scalar_lea.vmem [#allocation5], 16
    %v213 = vld [vmem:[%s212] sm:$0xff]
    %v214 = vld [vmem:[%s212 + $0x8] sm:$0xff]
    %v215 = vmul.f32 %v213, 0.05
    %v216 = vmul.f32 %v214, 0.05
    %217 = vmatprep.subr.mxu0 0.0
    %218 = vmatpush1.msra.mxu0 %v213
    %219 = vmatprep.subr.mxu0 0.0
    %220 = vmatpush1.msra.mxu0 %v214
    %221 = vmatprep.subr.mxu0 0.0
    %222 = vmatpush1.msra.mxu0 0.0
    %223 = vmatprep.subr.mxu0 0.0
    %224 = vmatpush1.msra.mxu0 0.0
    %225 = vmatprep.subr.mxu0 0.0
    %226 = vmatpush1.msra.mxu0 0.0
    %227 = vmatprep.subr.mxu0 0.0
    %228 = vmatpush1.msra.mxu0 0.0
    %229 = vmatprep.subr.mxu0 0.0
    %230 = vmatpush1.msra.mxu0 0.0
    %231 = vmatprep.subr.mxu0 0.0
    %232 = vmatpush1.msra.mxu0 0.0
    %233 = vmatprep.subr.mxu0 0.0
    %234 = vmatpush1.msra.mxu0 0.0
    %235 = vmatprep.subr.mxu0 0.0
    %236 = vmatpush1.msra.mxu0 0.0
    %237 = vmatprep.subr.mxu0 0.0
    %238 = vmatpush1.msra.mxu0 0.0
    %239 = vmatprep.subr.mxu0 0.0
    %240 = vmatpush1.msra.mxu0 0.0
    %241 = vmatprep.subr.mxu0 0.0
    %242 = vmatpush1.msra.mxu0 0.0
    %243 = vmatprep.subr.mxu0 0.0
    %244 = vmatpush1.msra.mxu0 0.0
    %245 = vmatprep.subr.mxu0 0.0
    %246 = vmatpush1.msra.mxu0 0.0
    %247 = vmatprep.subr.mxu0 0.0
    %248 = vmatpush1.msra.mxu0 0.0
    %249 = vmatprep.subr.mxu0 0.0
    %250 = vmatpush1.msra.mxu0 0.0
    %251 = vmatprep.subr.mxu0 0.0
    %252 = vmatpush1.msra.mxu0 0.0
    %253 = vmatprep.subr.mxu0 0.0
    %254 = vmatpush1.msra.mxu0 0.0
    %255 = vmatprep.subr.mxu0 0.0
    %256 = vmatpush1.msra.mxu0 0.0
    %257 = vmatprep.subr.mxu0 0.0
    %258 = vmatpush1.msra.mxu0 0.0
    %259 = vmatprep.subr.mxu0 0.0
    %260 = vmatpush1.msra.mxu0 0.0
    %261 = vmatprep.subr.mxu0 0.0
    %262 = vmatpush1.msra.mxu0 0.0
    %263 = vmatprep.subr.mxu0 0.0
    %264 = vmatpush1.msra.mxu0 0.0
    %265 = vmatprep.subr.mxu0 0.0
    %266 = vmatpush1.msra.mxu0 0.0
    %267 = vmatprep.subr.mxu0 0.0
    %268 = vmatpush1.msra.mxu0 0.0
    %269 = vmatprep.subr.mxu0 0.0
    %270 = vmatpush1.msra.mxu0 0.0
    %271 = vmatprep.subr.mxu0 0.0
    %272 = vmatpush1.msra.mxu0 0.0
    %273 = vmatprep.subr.mxu0 0.0
    %274 = vmatpush1.msra.mxu0 0.0
    %275 = vmatprep.subr.mxu0 0.0
    %276 = vmatpush1.msra.mxu0 0.0
    %277 = vmatprep.subr.mxu0 0.0
    %278 = vmatpush1.msra.mxu0 0.0
    %279 = vmatprep.subr.mxu0 0.0
    %280 = vmatpush1.msra.mxu0 0.0
    %281 = vmatprep.mubr.f32.mxu0 0.0
    %282 = vmatmul.mubr.f32.gmra.mrb[0].mxu0 %v48
    %v283 = vpop.f32.mrb[0].mxu0
    %v284 = vadd.f32 0.0, %v283
    %v285 = vpop.f32.mrb[0].mxu0
    %286 = vmatprep.mubr.f32.mxu0 0.0
    %287 = vmatmul.mubr.f32.gmra.mrb[0].mxu0 %v51
    %v288 = vpop.f32.mrb[0].mxu0
    %v289 = vadd.f32 0.0, %v288
    %v290 = vpop.f32.mrb[0].mxu0
    %291 = vdwg.mxu0
    %v292 = vadd.f32 %v215, %v284
    %v293 = vadd.f32 %v216, %v289
    %s294 = scalar_lea.vmem [#allocation7], 16
    %295 = vst [vmem:[%s294] sm:$0xff] %v292
    %296 = vst [vmem:[%s294 + $0x8] sm:$0xff] %v293
    %297 = vmatprep.subr.mxu0 0.0
    %298 = vmatpush1.msra.mxu0 %v292
    %299 = vmatprep.subr.mxu0 0.0
    %300 = vmatpush1.msra.mxu0 %v293
    %301 = vmatprep.subr.mxu0 0.0
    %302 = vmatpush1.msra.mxu0 0.0
    %303 = vmatprep.subr.mxu0 0.0
    %304 = vmatpush1.msra.mxu0 0.0
    %305 = vmatprep.subr.mxu0 0.0
    %306 = vmatpush1.msra.mxu0 0.0
    %307 = vmatprep.subr.mxu0 0.0
    %308 = vmatpush1.msra.mxu0 0.0
    %309 = vmatprep.subr.mxu0 0.0
    %310 = vmatpush1.msra.mxu0 0.0
    %311 = vmatprep.subr.mxu0 0.0
    %312 = vmatpush1.msra.mxu0 0.0
    %313 = vmatprep.subr.mxu0 0.0
    %314 = vmatpush1.msra.mxu0 0.0
    %315 = vmatprep.subr.mxu0 0.0
    %316 = vmatpush1.msra.mxu0 0.0
    %317 = vmatprep.subr.mxu0 0.0
    %318 = vmatpush1.msra.mxu0 0.0
    %319 = vmatprep.subr.mxu0 0.0
    %320 = vmatpush1.msra.mxu0 0.0
    %321 = vmatprep.subr.mxu0 0.0
    %322 = vmatpush1.msra.mxu0 0.0
    %323 = vmatprep.subr.mxu0 0.0
    %324 = vmatpush1.msra.mxu0 0.0
    %325 = vmatprep.subr.mxu0 0.0
    %326 = vmatpush1.msra.mxu0 0.0
    %327 = vmatprep.subr.mxu0 0.0
    %328 = vmatpush1.msra.mxu0 0.0
    %329 = vmatprep.subr.mxu0 0.0
    %330 = vmatpush1.msra.mxu0 0.0
    %331 = vmatprep.subr.mxu0 0.0
    %332 = vmatpush1.msra.mxu0 0.0
    %333 = vmatprep.subr.mxu0 0.0
    %334 = vmatpush1.msra.mxu0 0.0
    %335 = vmatprep.subr.mxu0 0.0
    %336 = vmatpush1.msra.mxu0 0.0
    %337 = vmatprep.subr.mxu0 0.0
    %338 = vmatpush1.msra.mxu0 0.0
    %339 = vmatprep.subr.mxu0 0.0
    %340 = vmatpush1.msra.mxu0 0.0
    %341 = vmatprep.subr.mxu0 0.0
    %342 = vmatpush1.msra.mxu0 0.0
    %343 = vmatprep.subr.mxu0 0.0
    %344 = vmatpush1.msra.mxu0 0.0
    %345 = vmatprep.subr.mxu0 0.0
    %346 = vmatpush1.msra.mxu0 0.0
    %347 = vmatprep.subr.mxu0 0.0
    %348 = vmatpush1.msra.mxu0 0.0
    %349 = vmatprep.subr.mxu0 0.0
    %350 = vmatpush1.msra.mxu0 0.0
    %351 = vmatprep.subr.mxu0 0.0
    %352 = vmatpush1.msra.mxu0 0.0
    %353 = vmatprep.subr.mxu0 0.0
    %354 = vmatpush1.msra.mxu0 0.0
    %355 = vmatprep.subr.mxu0 0.0
    %356 = vmatpush1.msra.mxu0 0.0
    %357 = vmatprep.subr.mxu0 0.0
    %358 = vmatpush1.msra.mxu0 0.0
    %359 = vmatprep.subr.mxu0 0.0
    %360 = vmatpush1.msra.mxu0 0.0
    %361 = vmatprep.mubr.f32.mxu0 0.0
    %362 = vmatmul.mubr.f32.gmra.mrb[0].mxu0 %v48
    %v363 = vpop.f32.mrb[0].mxu0
    %v364 = vadd.f32 0.0, %v363
    %v365 = vpop.f32.mrb[0].mxu0
    %366 = vmatprep.mubr.f32.mxu0 0.0
    %367 = vmatmul.mubr.f32.gmra.mrb[0].mxu0 %v51
    %v368 = vpop.f32.mrb[0].mxu0
    %v369 = vadd.f32 0.0, %v368
    %v370 = vpop.f32.mrb[0].mxu0
    %371 = vdwg.mxu0
    %v372 = vadd.f32 %v215, %v364
    %v373 = vadd.f32 %v216, %v369
    %s374 = scalar_lea.vmem [#allocation7], 80
    %375 = vst [vmem:[%s374] sm:$0xff] %v372
    %376 = vst [vmem:[%s374 + $0x8] sm:$0xff] %v373
    %s377 = scalar_lea.vmem [#allocation5], 32
    %v378 = vld [vmem:[%s377] sm:$0xff]
    %v379 = vld [vmem:[%s377 + $0x8] sm:$0xff]
    %v380 = vmul.f32 %v378, 0.05
    %v381 = vmul.f32 %v379, 0.05
    %382 = vmatprep.subr.mxu0 0.0
    %383 = vmatpush1.msra.mxu0 %v378
    %384 = vmatprep.subr.mxu0 0.0
    %385 = vmatpush1.msra.mxu0 %v379
    %386 = vmatprep.subr.mxu0 0.0
    %387 = vmatpush1.msra.mxu0 0.0
    %388 = vmatprep.subr.mxu0 0.0
    %389 = vmatpush1.msra.mxu0 0.0
    %390 = vmatprep.subr.mxu0 0.0
    %391 = vmatpush1.msra.mxu0 0.0
    %392 = vmatprep.subr.mxu0 0.0
    %393 = vmatpush1.msra.mxu0 0.0
    %394 = vmatprep.subr.mxu0 0.0
    %395 = vmatpush1.msra.mxu0 0.0
    %396 = vmatprep.subr.mxu0 0.0
    %397 = vmatpush1.msra.mxu0 0.0
    %398 = vmatprep.subr.mxu0 0.0
    %399 = vmatpush1.msra.mxu0 0.0
    %400 = vmatprep.subr.mxu0 0.0
    %401 = vmatpush1.msra.mxu0 0.0
    %402 = vmatprep.subr.mxu0 0.0
    %403 = vmatpush1.msra.mxu0 0.0
    %404 = vmatprep.subr.mxu0 0.0
    %405 = vmatpush1.msra.mxu0 0.0
    %406 = vmatprep.subr.mxu0 0.0
    %407 = vmatpush1.msra.mxu0 0.0
    %408 = vmatprep.subr.mxu0 0.0
    %409 = vmatpush1.msra.mxu0 0.0
    %410 = vmatprep.subr.mxu0 0.0
    %411 = vmatpush1.msra.mxu0 0.0
    %412 = vmatprep.subr.mxu0 0.0
    %413 = vmatpush1.msra.mxu0 0.0
    %414 = vmatprep.subr.mxu0 0.0
    %415 = vmatpush1.msra.mxu0 0.0
    %416 = vmatprep.subr.mxu0 0.0
    %417 = vmatpush1.msra.mxu0 0.0
    %418 = vmatprep.subr.mxu0 0.0
    %419 = vmatpush1.msra.mxu0 0.0
    %420 = vmatprep.subr.mxu0 0.0
    %421 = vmatpush1.msra.mxu0 0.0
    %422 = vmatprep.subr.mxu0 0.0
    %423 = vmatpush1.msra.mxu0 0.0
    %424 = vmatprep.subr.mxu0 0.0
    %425 = vmatpush1.msra.mxu0 0.0
    %426 = vmatprep.subr.mxu0 0.0
    %427 = vmatpush1.msra.mxu0 0.0
    %428 = vmatprep.subr.mxu0 0.0
    %429 = vmatpush1.msra.mxu0 0.0
    %430 = vmatprep.subr.mxu0 0.0
    %431 = vmatpush1.msra.mxu0 0.0
    %432 = vmatprep.subr.mxu0 0.0
    %433 = vmatpush1.msra.mxu0 0.0
    %434 = vmatprep.subr.mxu0 0.0
    %435 = vmatpush1.msra.mxu0 0.0
    %436 = vmatprep.subr.mxu0 0.0
    %437 = vmatpush1.msra.mxu0 0.0
    %438 = vmatprep.subr.mxu0 0.0
    %439 = vmatpush1.msra.mxu0 0.0
    %440 = vmatprep.subr.mxu0 0.0
    %441 = vmatpush1.msra.mxu0 0.0
    %442 = vmatprep.subr.mxu0 0.0
    %443 = vmatpush1.msra.mxu0 0.0
    %444 = vmatprep.subr.mxu0 0.0
    %445 = vmatpush1.msra.mxu0 0.0
    %446 = vmatprep.mubr.f32.mxu0 0.0
    %447 = vmatmul.mubr.f32.gmra.mrb[0].mxu0 %v48
    %v448 = vpop.f32.mrb[0].mxu0
    %v449 = vadd.f32 0.0, %v448
    %v450 = vpop.f32.mrb[0].mxu0
    %451 = vmatprep.mubr.f32.mxu0 0.0
    %452 = vmatmul.mubr.f32.gmra.mrb[0].mxu0 %v51
    %v453 = vpop.f32.mrb[0].mxu0
    %v454 = vadd.f32 0.0, %v453
    %v455 = vpop.f32.mrb[0].mxu0
    %456 = vdwg.mxu0
    %v457 = vadd.f32 %v380, %v449
    %v458 = vadd.f32 %v381, %v454
    %s459 = scalar_lea.vmem [#allocation7], 32
    %460 = vst [vmem:[%s459] sm:$0xff] %v457
    %461 = vst [vmem:[%s459 + $0x8] sm:$0xff] %v458
    %462 = vmatprep.subr.mxu0 0.0
    %463 = vmatpush1.msra.mxu0 %v457
    %464 = vmatprep.subr.mxu0 0.0
    %465 = vmatpush1.msra.mxu0 %v458
    %466 = vmatprep.subr.mxu0 0.0
    %467 = vmatpush1.msra.mxu0 0.0
    %468 = vmatprep.subr.mxu0 0.0
    %469 = vmatpush1.msra.mxu0 0.0
    %470 = vmatprep.subr.mxu0 0.0
    %471 = vmatpush1.msra.mxu0 0.0
    %472 = vmatprep.subr.mxu0 0.0
    %473 = vmatpush1.msra.mxu0 0.0
    %474 = vmatprep.subr.mxu0 0.0
    %475 = vmatpush1.msra.mxu0 0.0
    %476 = vmatprep.subr.mxu0 0.0
    %477 = vmatpush1.msra.mxu0 0.0
    %478 = vmatprep.subr.mxu0 0.0
    %479 = vmatpush1.msra.mxu0 0.0
    %480 = vmatprep.subr.mxu0 0.0
    %481 = vmatpush1.msra.mxu0 0.0
    %482 = vmatprep.subr.mxu0 0.0
    %483 = vmatpush1.msra.mxu0 0.0
    %484 = vmatprep.subr.mxu0 0.0
    %485 = vmatpush1.msra.mxu0 0.0
    %486 = vmatprep.subr.mxu0 0.0
    %487 = vmatpush1.msra.mxu0 0.0
    %488 = vmatprep.subr.mxu0 0.0
    %489 = vmatpush1.msra.mxu0 0.0
    %490 = vmatprep.subr.mxu0 0.0
    %491 = vmatpush1.msra.mxu0 0.0
    %492 = vmatprep.subr.mxu0 0.0
    %493 = vmatpush1.msra.mxu0 0.0
    %494 = vmatprep.subr.mxu0 0.0
    %495 = vmatpush1.msra.mxu0 0.0
    %496 = vmatprep.subr.mxu0 0.0
    %497 = vmatpush1.msra.mxu0 0.0
    %498 = vmatprep.subr.mxu0 0.0
    %499 = vmatpush1.msra.mxu0 0.0
    %500 = vmatprep.subr.mxu0 0.0
    %501 = vmatpush1.msra.mxu0 0.0
    %502 = vmatprep.subr.mxu0 0.0
    %503 = vmatpush1.msra.mxu0 0.0
    %504 = vmatprep.subr.mxu0 0.0
    %505 = vmatpush1.msra.mxu0 0.0
    %506 = vmatprep.subr.mxu0 0.0
    %507 = vmatpush1.msra.mxu0 0.0
    %508 = vmatprep.subr.mxu0 0.0
    %509 = vmatpush1.msra.mxu0 0.0
    %510 = vmatprep.subr.mxu0 0.0
    %511 = vmatpush1.msra.mxu0 0.0
    %512 = vmatprep.subr.mxu0 0.0
    %513 = vmatpush1.msra.mxu0 0.0
    %514 = vmatprep.subr.mxu0 0.0
    %515 = vmatpush1.msra.mxu0 0.0
    %516 = vmatprep.subr.mxu0 0.0
    %517 = vmatpush1.msra.mxu0 0.0
    %518 = vmatprep.subr.mxu0 0.0
    %519 = vmatpush1.msra.mxu0 0.0
    %520 = vmatprep.subr.mxu0 0.0
    %521 = vmatpush1.msra.mxu0 0.0
    %522 = vmatprep.subr.mxu0 0.0
    %523 = vmatpush1.msra.mxu0 0.0
    %524 = vmatprep.subr.mxu0 0.0
    %525 = vmatpush1.msra.mxu0 0.0
    %526 = vmatprep.mubr.f32.mxu0 0.0
    %527 = vmatmul.mubr.f32.gmra.mrb[0].mxu0 %v48
    %v528 = vpop.f32.mrb[0].mxu0
    %v529 = vadd.f32 0.0, %v528
    %v530 = vpop.f32.mrb[0].mxu0
    %531 = vmatprep.mubr.f32.mxu0 0.0
    %532 = vmatmul.mubr.f32.gmra.mrb[0].mxu0 %v51
    %v533 = vpop.f32.mrb[0].mxu0
    %v534 = vadd.f32 0.0, %v533
    %v535 = vpop.f32.mrb[0].mxu0
    %536 = vdwg.mxu0
    %v537 = vadd.f32 %v380, %v529
    %v538 = vadd.f32 %v381, %v534
    %s539 = scalar_lea.vmem [#allocation7], 96
    %540 = vst [vmem:[%s539] sm:$0xff] %v537
    %541 = vst [vmem:[%s539 + $0x8] sm:$0xff] %v538
    %s542 = scalar_lea.vmem [#allocation5], 48
    %v543 = vld [vmem:[%s542] sm:$0xff]
    %v544 = vld [vmem:[%s542 + $0x8] sm:$0xff]
    %v545 = vmul.f32 %v543, 0.05
    %v546 = vmul.f32 %v544, 0.05
    %547 = vmatprep.subr.mxu0 0.0
    %548 = vmatpush1.msra.mxu0 %v543
    %549 = vmatprep.subr.mxu0 0.0
    %550 = vmatpush1.msra.mxu0 %v544
    %551 = vmatprep.subr.mxu0 0.0
    %552 = vmatpush1.msra.mxu0 0.0
    %553 = vmatprep.subr.mxu0 0.0
    %554 = vmatpush1.msra.mxu0 0.0
    %555 = vmatprep.subr.mxu0 0.0
    %556 = vmatpush1.msra.mxu0 0.0
    %557 = vmatprep.subr.mxu0 0.0
    %558 = vmatpush1.msra.mxu0 0.0
    %559 = vmatprep.subr.mxu0 0.0
    %560 = vmatpush1.msra.mxu0 0.0
    %561 = vmatprep.subr.mxu0 0.0
    %562 = vmatpush1.msra.mxu0 0.0
    %563 = vmatprep.subr.mxu0 0.0
    %564 = vmatpush1.msra.mxu0 0.0
    %565 = vmatprep.subr.mxu0 0.0
    %566 = vmatpush1.msra.mxu0 0.0
    %567 = vmatprep.subr.mxu0 0.0
    %568 = vmatpush1.msra.mxu0 0.0
    %569 = vmatprep.subr.mxu0 0.0
    %570 = vmatpush1.msra.mxu0 0.0
    %571 = vmatprep.subr.mxu0 0.0
    %572 = vmatpush1.msra.mxu0 0.0
    %573 = vmatprep.subr.mxu0 0.0
    %574 = vmatpush1.msra.mxu0 0.0
    %575 = vmatprep.subr.mxu0 0.0
    %576 = vmatpush1.msra.mxu0 0.0
    %577 = vmatprep.subr.mxu0 0.0
    %578 = vmatpush1.msra.mxu0 0.0
    %579 = vmatprep.subr.mxu0 0.0
    %580 = vmatpush1.msra.mxu0 0.0
    %581 = vmatprep.subr.mxu0 0.0
    %582 = vmatpush1.msra.mxu0 0.0
    %583 = vmatprep.subr.mxu0 0.0
    %584 = vmatpush1.msra.mxu0 0.0
    %585 = vmatprep.subr.mxu0 0.0
    %586 = vmatpush1.msra.mxu0 0.0
    %587 = vmatprep.subr.mxu0 0.0
    %588 = vmatpush1.msra.mxu0 0.0
    %589 = vmatprep.subr.mxu0 0.0
    %590 = vmatpush1.msra.mxu0 0.0
    %591 = vmatprep.subr.mxu0 0.0
    %592 = vmatpush1.msra.mxu0 0.0
    %593 = vmatprep.subr.mxu0 0.0
    %594 = vmatpush1.msra.mxu0 0.0
    %595 = vmatprep.subr.mxu0 0.0
    %596 = vmatpush1.msra.mxu0 0.0
    %597 = vmatprep.subr.mxu0 0.0
    %598 = vmatpush1.msra.mxu0 0.0
    %599 = vmatprep.subr.mxu0 0.0
    %600 = vmatpush1.msra.mxu0 0.0
    %601 = vmatprep.subr.mxu0 0.0
    %602 = vmatpush1.msra.mxu0 0.0
    %603 = vmatprep.subr.mxu0 0.0
    %604 = vmatpush1.msra.mxu0 0.0
    %605 = vmatprep.subr.mxu0 0.0
    %606 = vmatpush1.msra.mxu0 0.0
    %607 = vmatprep.subr.mxu0 0.0
    %608 = vmatpush1.msra.mxu0 0.0
    %609 = vmatprep.subr.mxu0 0.0
    %610 = vmatpush1.msra.mxu0 0.0
    %611 = vmatprep.mubr.f32.mxu0 0.0
    %612 = vmatmul.mubr.f32.gmra.mrb[0].mxu0 %v48
    %v613 = vpop.f32.mrb[0].mxu0
    %v614 = vadd.f32 0.0, %v613
    %v615 = vpop.f32.mrb[0].mxu0
    %616 = vmatprep.mubr.f32.mxu0 0.0
    %617 = vmatmul.mubr.f32.gmra.mrb[0].mxu0 %v51
    %v618 = vpop.f32.mrb[0].mxu0
    %v619 = vadd.f32 0.0, %v618
    %v620 = vpop.f32.mrb[0].mxu0
    %621 = vdwg.mxu0
    %v622 = vadd.f32 %v545, %v614
    %v623 = vadd.f32 %v546, %v619
    %s624 = scalar_lea.vmem [#allocation7], 48
    %625 = vst [vmem:[%s624] sm:$0xff] %v622
    %626 = vst [vmem:[%s624 + $0x8] sm:$0xff] %v623
    %627 = vmatprep.subr.mxu0 0.0
    %628 = vmatpush1.msra.mxu0 %v622
    %629 = vmatprep.subr.mxu0 0.0
    %630 = vmatpush1.msra.mxu0 %v623
    %631 = vmatprep.subr.mxu0 0.0
    %632 = vmatpush1.msra.mxu0 0.0
    %633 = vmatprep.subr.mxu0 0.0
    %634 = vmatpush1.msra.mxu0 0.0
    %635 = vmatprep.subr.mxu0 0.0
    %636 = vmatpush1.msra.mxu0 0.0
    %637 = vmatprep.subr.mxu0 0.0
    %638 = vmatpush1.msra.mxu0 0.0
    %639 = vmatprep.subr.mxu0 0.0
    %640 = vmatpush1.msra.mxu0 0.0
    %641 = vmatprep.subr.mxu0 0.0
    %642 = vmatpush1.msra.mxu0 0.0
    %643 = vmatprep.subr.mxu0 0.0
    %644 = vmatpush1.msra.mxu0 0.0
    %645 = vmatprep.subr.mxu0 0.0
    %646 = vmatpush1.msra.mxu0 0.0
    %647 = vmatprep.subr.mxu0 0.0
    %648 = vmatpush1.msra.mxu0 0.0
    %649 = vmatprep.subr.mxu0 0.0
    %650 = vmatpush1.msra.mxu0 0.0
    %651 = vmatprep.subr.mxu0 0.0
    %652 = vmatpush1.msra.mxu0 0.0
    %653 = vmatprep.subr.mxu0 0.0
    %654 = vmatpush1.msra.mxu0 0.0
    %655 = vmatprep.subr.mxu0 0.0
    %656 = vmatpush1.msra.mxu0 0.0
    %657 = vmatprep.subr.mxu0 0.0
    %658 = vmatpush1.msra.mxu0 0.0
    %659 = vmatprep.subr.mxu0 0.0
    %660 = vmatpush1.msra.mxu0 0.0
    %661 = vmatprep.subr.mxu0 0.0
    %662 = vmatpush1.msra.mxu0 0.0
    %663 = vmatprep.subr.mxu0 0.0
    %664 = vmatpush1.msra.mxu0 0.0
    %665 = vmatprep.subr.mxu0 0.0
    %666 = vmatpush1.msra.mxu0 0.0
    %667 = vmatprep.subr.mxu0 0.0
    %668 = vmatpush1.msra.mxu0 0.0
    %669 = vmatprep.subr.mxu0 0.0
    %670 = vmatpush1.msra.mxu0 0.0
    %671 = vmatprep.subr.mxu0 0.0
    %672 = vmatpush1.msra.mxu0 0.0
    %673 = vmatprep.subr.mxu0 0.0
    %674 = vmatpush1.msra.mxu0 0.0
    %675 = vmatprep.subr.mxu0 0.0
    %676 = vmatpush1.msra.mxu0 0.0
    %677 = vmatprep.subr.mxu0 0.0
    %678 = vmatpush1.msra.mxu0 0.0
    %679 = vmatprep.subr.mxu0 0.0
    %680 = vmatpush1.msra.mxu0 0.0
    %681 = vmatprep.subr.mxu0 0.0
    %682 = vmatpush1.msra.mxu0 0.0
    %683 = vmatprep.subr.mxu0 0.0
    %684 = vmatpush1.msra.mxu0 0.0
    %685 = vmatprep.subr.mxu0 0.0
    %686 = vmatpush1.msra.mxu0 0.0
    %687 = vmatprep.subr.mxu0 0.0
    %688 = vmatpush1.msra.mxu0 0.0
    %689 = vmatprep.subr.mxu0 0.0
    %690 = vmatpush1.msra.mxu0 0.0
    %691 = vmatprep.mubr.f32.mxu0 0.0
    %692 = vmatmul.mubr.f32.gmra.mrb[0].mxu0 %v48
    %v693 = vpop.f32.mrb[0].mxu0
    %v694 = vadd.f32 0.0, %v693
    %v695 = vpop.f32.mrb[0].mxu0
    %696 = vmatprep.mubr.f32.mxu0 0.0
    %697 = vmatmul.mubr.f32.gmra.mrb[0].mxu0 %v51
    %v698 = vpop.f32.mrb[0].mxu0
    %v699 = vadd.f32 0.0, %v698
    %v700 = vpop.f32.mrb[0].mxu0
    %701 = vdwg.mxu0
    %v702 = vadd.f32 %v545, %v694
    %v703 = vadd.f32 %v546, %v699
    %s704 = scalar_lea.vmem [#allocation7], 112
    %705 = vst [vmem:[%s704] sm:$0xff] %v702
    %706 = vst [vmem:[%s704 + $0x8] sm:$0xff] %v703
    // Predicated region
    $region18: #{tpu_custom_call.1} parent=1 // pred_check
      _
    $region19: #{tpu_custom_call.1} parent=1 // pred_check_branch
      %708 = sbr.rel (0) target = $region21
    $region20: #{tpu_custom_call.1} parent=1 // pred_region
      %s710 = ssub.s32 2048, 2048
      %711 = vsyncadd [#allocation4], %s710
      %s712 = sshll.u32 [#allocation7], 4
      %s713 = int_to_ptr.vmem [resolvable:$true] %s712
      %718 = dma.vmem_to_hbm [thread:$0]  %s713, 2048, %s2, [#allocation4], 128, 128, 8
    $region21: #{tpu_custom_call.1} parent=1 // pred_fallthru
      _
    // Predicated region
    $region22: #{tpu_custom_call.1} parent=1 // pred_check
      _
    $region23: #{tpu_custom_call.1} parent=1 // pred_check_branch
      %720 = sbr.rel (0) target = $region25
    $region24: #{tpu_custom_call.1} parent=1 // pred_region
      %721 = dma.done [#allocation4], 2048
    $region25: #{tpu_custom_call.1} parent=1 // pred_fallthru
      _
    %722 = vsyncpa [#allocation3], 1
    %723 = vsyncpa [#allocation6], 1
    %724 = vsyncpa [#allocation4], 1

</llo_original>
